<compile_context>
chip_gen: v6e
topology: v6e:2x2x1
jax: 0.10.0
libtpu: 0.0.40
codegen_flags: <defaults>
</compile_context>

<pallas_src>
import functools

import jax
import jax.numpy as jnp
from jax.experimental import pallas as pl
from jax.experimental.pallas import tpu as pltpu


def _round_up(x, m):
    return (x + m - 1) // m * m


def _cdiv(a, b):
    return -(-a // b)


# --------------------------------------------------------------------------
# Pallas kernel: fused trunk + (mu | log_sigma) heads, params in one slab
# --------------------------------------------------------------------------
def _p_net_kernel(PD, compute_dtype, x_ref, p_ref, out_ref):
    f32 = jnp.float32

    x = x_ref[...]                                   # (TB, PD) f32

    # Full-lane (PD, PD) weight tiles — static, aligned slices of the resident slab.
    w0  = p_ref[0 * PD:1 * PD, :]                    # trunk layer 0
    w1  = p_ref[1 * PD:2 * PD, :]                    # trunk layer 1
    wh0 = p_ref[2 * PD:3 * PD, :]                    # heads layer 0  [Wm0 | Ws0]
    wh1 = p_ref[3 * PD:4 * PD, :]                    # heads layer 1  blkdiag(Wm1, Ws1)

    # Bias / clamp-bound block: one aligned (8, PD) load, rows sliced as values.
    bias = p_ref[4 * PD:4 * PD + 8, :].astype(f32)   # (8, PD)
    b0, b1, bh0, bh1 = bias[0:1], bias[1:2], bias[2:3], bias[3:4]
    lo, hi = bias[4:5], bias[5:6]

    def mm(a, w):
        return jnp.dot(a.astype(compute_dtype), w, preferred_element_type=f32)

    # trunk MLP: Linear -> ReLU -> Linear (no activation on last layer)
    h = jnp.maximum(mm(x, w0) + b0, 0.0)             # (TB, PD)
    a = mm(h, w1) + b1                               # (TB, PD)

    # fused heads: one wide Linear -> ReLU, then block-diagonal Linear
    hh = jnp.maximum(mm(a, wh0) + bh0, 0.0)          # (TB, PD)
    y = mm(hh, wh1) + bh1                            # (TB, PD), cols [0,2D) live

    # Clamp only the log_sigma columns [D, 2D): lo/hi rows hold (-inf, +inf)
    # on mu columns AND on the zero padding columns >= 2D (padding is sliced
    # off in the wrapper and must never be reused un-clamped).
    y = jnp.minimum(jnp.maximum(y, lo), hi)

    out_ref[...] = y.astype(out_ref.dtype)


# --------------------------------------------------------------------------
# One-time parameter packing (hoisted out of the forward hot path)
# --------------------------------------------------------------------------
def pack_params(params, *, log_sig_min=-20.0, log_sig_max=2.0, dtype=jnp.float32):
    """params = [(w0,b0),(w1,b1),(wm0,bm0),(wm1,bm1),(ws0,bs0),(ws1,bs1)],
    weights stored (in, out).  Returns (slab, dims) with dims = (S, L, D, PD).

    Slab layout (rows x PD lanes), PD = round_up(max dim, 128):
      [0*PD:1*PD]  w0   (S,L)   zero-padded to (PD,PD)
      [1*PD:2*PD]  w1   (L,L)
      [2*PD:3*PD]  wh0  (L,2L)  = [Wm0 | Ws0]
      [3*PD:4*PD]  wh1  (2L,2D) = blkdiag(Wm1, Ws1)
      [4*PD:4*PD+8] bias block: b0, b1, bh0, bh1, clamp-lo, clamp-hi, 0, 0
    """
    (w0, b0), (w1, b1), (wm0, bm0), (wm1, bm1), (ws0, bs0), (ws1, bs1) = params
    S, L = w0.shape
    D = wm1.shape[1]
    PD = max(128, _round_up(max(S, L, 2 * L, 2 * D), 128))

    wh0 = jnp.concatenate([wm0, ws0], axis=1)                       # (L, 2L)
    bh0 = jnp.concatenate([bm0, bs0], axis=0)                       # (2L,)
    wh1 = jnp.zeros((2 * L, 2 * D), jnp.float32)
    wh1 = wh1.at[:L, :D].set(wm1).at[L:, D:].set(ws1)               # (2L, 2D)
    bh1 = jnp.concatenate([bm1, bs1], axis=0)                       # (2D,)

    def pad_sq(w):
        return jnp.zeros((PD, PD), jnp.float32).at[:w.shape[0], :w.shape[1]].set(w)

    lo = jnp.full((PD,), -jnp.inf, jnp.float32).at[D:2 * D].set(log_sig_min)
    hi = jnp.full((PD,), jnp.inf, jnp.float32).at[D:2 * D].set(log_sig_max)

    bias_blk = jnp.zeros((8, PD), jnp.float32)
    bias_blk = bias_blk.at[0, :L].set(b0).at[1, :L].set(b1)
    bias_blk = bias_blk.at[2, :2 * L].set(bh0).at[3, :2 * D].set(bh1)
    bias_blk = bias_blk.at[4].set(lo).at[5].set(hi)

    slab = jnp.concatenate(
        [pad_sq(w0), pad_sq(w1), pad_sq(wh0), pad_sq(wh1), bias_blk], axis=0)
    return slab.astype(dtype), (S, L, D, PD)


# --------------------------------------------------------------------------
# Jitted forward: pad batch, launch kernel, slice (mu, log_sigma)
# --------------------------------------------------------------------------
@functools.partial(jax.jit,
                   static_argnames=("dims", "compute_dtype", "max_batch_tile"))
def p_network_forward(state, slab, *, dims, compute_dtype=jnp.float32,
                      max_batch_tile=1024):
    """state: (B, state_dim) f32; slab/dims from pack_params().
    Returns (mu, log_sigma), each (B, num_atoms*3) f32 (clamp baked into slab)."""
    S, L, D, PD = dims
    B = state.shape[0]

    # Batch tiling: minimal padding; keep >=2 tiles for v7x's two TensorCores
    # once B is big enough (near-no-op on single-TC v5e/v6e).
    n_tiles = max(1, _cdiv(B, max_batch_tile))
    if n_tiles == 1 and B >= 256:
        n_tiles = 2
    TB = _round_up(_cdiv(B, n_tiles), 8)
    B_pad = n_tiles * TB

    # Lane-dense input: pad state to (B_pad, PD) with zeros (exact — padded
    # lanes hit zero weight rows, padded rows are sliced off below).
    x = jnp.zeros((B_pad, PD), jnp.float32).at[:B, :S].set(state)

    kernel = functools.partial(_p_net_kernel, PD, compute_dtype)

    out = pl.pallas_call(
        kernel,
        out_shape=jax.ShapeDtypeStruct((B_pad, PD), jnp.float32),
        grid=(n_tiles,),
        in_specs=[
            pl.BlockSpec((TB, PD), lambda i: (i, 0)),       # batch-tiled state
            pl.BlockSpec(slab.shape, lambda i: (0, 0)),     # VMEM-resident params
        ],
        out_specs=pl.BlockSpec((TB, PD), lambda i: (i, 0)),  # lane-dense output
        compiler_params=pltpu.CompilerParams(
            dimension_semantics=("parallel",)),
    )(x, slab)

    return out[:B, :D], out[:B, D:2 * D]


# --------------------------------------------------------------------------
# Deterministic parameter construction (synthetic; mimics module __init__ shapes)
# --------------------------------------------------------------------------
def make_params(key, state_dim, latent_size, num_atoms):
    out_dim = num_atoms * 3
    sizes = [
        (state_dim, latent_size), (latent_size, latent_size),   # trunk mlp
        (latent_size, latent_size), (latent_size, out_dim),     # mu_layer
        (latent_size, latent_size), (latent_size, out_dim),     # log_sigma_layer
    ]
    params = []
    for fan_in, fan_out in sizes:
        key, kw, kb = jax.random.split(key, 3)
        scale = 1.0 / jnp.sqrt(jnp.float32(fan_in))
        w = jax.random.uniform(kw, (fan_in, fan_out), jnp.float32, -scale, scale)
        b = jax.random.uniform(kb, (fan_out,), jnp.float32, -scale, scale)
        params.append((w, b))
    return params


# --------------------------------------------------------------------------
# Pure-JAX reference for correctness checking
# --------------------------------------------------------------------------
def reference_forward(state, params, log_sig_min=-20.0, log_sig_max=2.0):
    (w0, b0), (w1, b1), (wm0, bm0), (wm1, bm1), (ws0, bs0), (ws1, bs1) = params
    h = jnp.maximum(state @ w0 + b0, 0.0)
    a = h @ w1 + b1
    hm = jnp.maximum(a @ wm0 + bm0, 0.0)
    mu = hm @ wm1 + bm1
    hs = jnp.maximum(a @ ws0 + bs0, 0.0)
    log_sigma = jnp.clip(hs @ ws1 + bs1, log_sig_min, log_sig_max)
    return mu, log_sigma


if __name__ == "__main__":
    # Small synthetic config: num_atoms=4 -> state_dim=16, latent_size=32,
    # layer_num_p=2, output dim = num_atoms*3 = 12, batch=8.
    num_atoms = 4
    state_dim = num_atoms * 4
    latent_size = 32
    out_dim = num_atoms * 3
    batch = 8

    key = jax.random.PRNGKey(0)
    key, kp, ks = jax.random.split(key, 3)
    params = make_params(kp, state_dim, latent_size, num_atoms)
    state = jax.random.normal(ks, (batch, state_dim), jnp.float32)

    # Pack once (hoisted off the hot path); slab stays device-resident.
    slab_f32, dims = pack_params(params)
    slab_f32 = jax.device_put(slab_f32)

    mu, log_sigma = p_network_forward(state, slab_f32, dims=dims)
    jax.block_until_ready((mu, log_sigma))

    mu_ref, ls_ref = reference_forward(state, params)
    assert mu.shape == (batch, out_dim) and log_sigma.shape == (batch, out_dim)
    assert jnp.allclose(mu, mu_ref, atol=1e-5, rtol=1e-5)
    assert jnp.allclose(log_sigma, ls_ref, atol=1e-5, rtol=1e-5)

    # Non-tile-aligned batch, large enough to exercise the >=2-tile (v7x) rule.
    state2 = jax.random.normal(jax.random.PRNGKey(1), (261, state_dim), jnp.float32)
    mu2, ls2 = p_network_forward(state2, slab_f32, dims=dims)
    jax.block_until_ready((mu2, ls2))
    mu2_ref, ls2_ref = reference_forward(state2, params)
    assert jnp.allclose(mu2, mu2_ref, atol=1e-5, rtol=1e-5)
    assert jnp.allclose(ls2, ls2_ref, atol=1e-5, rtol=1e-5)

    # Tiny odd batch (pad + slice path).
    state3 = jax.random.normal(jax.random.PRNGKey(2), (5, state_dim), jnp.float32)
    mu3, ls3 = p_network_forward(state3, slab_f32, dims=dims)
    jax.block_until_ready((mu3, ls3))
    mu3_ref, ls3_ref = reference_forward(state3, params)
    assert jnp.allclose(mu3, mu3_ref, atol=1e-5, rtol=1e-5)
    assert jnp.allclose(ls3, ls3_ref, atol=1e-5, rtol=1e-5)

    # Optional bf16-operand path: bf16 slab + bf16 dot operands, f32 accumulation.
    slab_bf16, dims_b = pack_params(params, dtype=jnp.bfloat16)
    mu_b, ls_b = p_network_forward(state, slab_bf16, dims=dims_b,
                                   compute_dtype=jnp.bfloat16)
    jax.block_until_ready((mu_b, ls_b))
    assert jnp.allclose(mu_b, mu_ref, atol=5e-2, rtol=5e-2)
    assert jnp.allclose(ls_b, ls_ref, atol=5e-2, rtol=5e-2)

    # TODO(synk): sample()/batch_sample()/get_log_probs() use torch.distributions
    # rsample/log_prob; RNG-based sampling stays outside the kernel (forward()
    # semantics only).
    # TODO(synk): the MLP helper is assumed to be Linear->ReLU->Dropout with no
    # activation on the final layer of each sub-MLP (dropout = identity at
    # inference); verify against the real MLP construction.
    print("KERNEL_OK")
</pallas_src>

<mosaic_0001>
module attributes {stable_mosaic.version = 11 : i64} {
  func.func @_p_net_kernel(%arg0: i32, %arg1: memref<8x128xf32, #tpu.memory_space<vmem>>, %arg2: memref<520x128xf32, #tpu.memory_space<vmem>>, %arg3: memref<8x128xf32, #tpu.memory_space<vmem>>) attributes {dimension_semantics = [#tpu.dimension_semantics<parallel>], iteration_bounds = array<i64: 1>, scalar_prefetch = 0 : i64, scratch_operands = 0 : i64, tpu.core_type = #tpu.core_type<tc>, window_params = [{transform_indices = @transform_0, window_bounds = array<i64: 8, 128>}, {pipeline_mode = #tpu.pipeline_mode<synchronous>, transform_indices = @transform_1, window_bounds = array<i64: 520, 128>}, {transform_indices = @transform_2, window_bounds = array<i64: 8, 128>}]} {
    %c0 = arith.constant 0 : index
    %c0_0 = arith.constant 0 : index
    %0 = vector.load %arg1[%c0, %c0_0] : memref<8x128xf32, #tpu.memory_space<vmem>>, vector<8x128xf32>
    %c0_1 = arith.constant 0 : index
    %c0_2 = arith.constant 0 : index
    %1 = vector.load %arg2[%c0_1, %c0_2] : memref<520x128xf32, #tpu.memory_space<vmem>>, vector<128x128xf32>
    %c128 = arith.constant 128 : index
    %c0_3 = arith.constant 0 : index
    %2 = vector.load %arg2[%c128, %c0_3] : memref<520x128xf32, #tpu.memory_space<vmem>>, vector<128x128xf32>
    %c256 = arith.constant 256 : index
    %c0_4 = arith.constant 0 : index
    %3 = vector.load %arg2[%c256, %c0_4] : memref<520x128xf32, #tpu.memory_space<vmem>>, vector<128x128xf32>
    %c384 = arith.constant 384 : index
    %c0_5 = arith.constant 0 : index
    %4 = vector.load %arg2[%c384, %c0_5] : memref<520x128xf32, #tpu.memory_space<vmem>>, vector<128x128xf32>
    %c512 = arith.constant 512 : index
    %c0_6 = arith.constant 0 : index
    %5 = vector.load %arg2[%c512, %c0_6] : memref<520x128xf32, #tpu.memory_space<vmem>>, vector<8x128xf32>
    %6 = vector.extract_strided_slice %5 {offsets = [0, 0], sizes = [1, 128], strides = [1, 1]} : vector<8x128xf32> to vector<1x128xf32>
    %7 = vector.extract_strided_slice %5 {offsets = [1, 0], sizes = [1, 128], strides = [1, 1]} : vector<8x128xf32> to vector<1x128xf32>
    %8 = vector.extract_strided_slice %5 {offsets = [2, 0], sizes = [1, 128], strides = [1, 1]} : vector<8x128xf32> to vector<1x128xf32>
    %9 = vector.extract_strided_slice %5 {offsets = [3, 0], sizes = [1, 128], strides = [1, 1]} : vector<8x128xf32> to vector<1x128xf32>
    %10 = vector.extract_strided_slice %5 {offsets = [4, 0], sizes = [1, 128], strides = [1, 1]} : vector<8x128xf32> to vector<1x128xf32>
    %11 = vector.extract_strided_slice %5 {offsets = [5, 0], sizes = [1, 128], strides = [1, 1]} : vector<8x128xf32> to vector<1x128xf32>
    %cst = arith.constant dense<0.000000e+00> : vector<8x128xf32>
    %12 = tpu.matmul %0, %1, %cst {dimension_numbers = #tpu.dot_dimension_numbers<[1], [0], [0], [1], [0, 0, 1, 1], [], []>} : vector<8x128xf32>, vector<128x128xf32>, vector<8x128xf32> -> vector<8x128xf32>
    %13 = vector.broadcast %6 : vector<1x128xf32> to vector<8x128xf32>
    %14 = arith.addf %12, %13 : vector<8x128xf32>
    %cst_7 = arith.constant 0.000000e+00 : f32
    %15 = vector.broadcast %cst_7 : f32 to vector<8x128xf32>
    %16 = arith.maximumf %14, %15 : vector<8x128xf32>
    %cst_8 = arith.constant dense<0.000000e+00> : vector<8x128xf32>
    %17 = tpu.matmul %16, %2, %cst_8 {dimension_numbers = #tpu.dot_dimension_numbers<[1], [0], [0], [1], [0, 0, 1, 1], [], []>} : vector<8x128xf32>, vector<128x128xf32>, vector<8x128xf32> -> vector<8x128xf32>
    %18 = vector.broadcast %7 : vector<1x128xf32> to vector<8x128xf32>
    %19 = arith.addf %17, %18 : vector<8x128xf32>
    %cst_9 = arith.constant dense<0.000000e+00> : vector<8x128xf32>
    %20 = tpu.matmul %19, %3, %cst_9 {dimension_numbers = #tpu.dot_dimension_numbers<[1], [0], [0], [1], [0, 0, 1, 1], [], []>} : vector<8x128xf32>, vector<128x128xf32>, vector<8x128xf32> -> vector<8x128xf32>
    %21 = vector.broadcast %8 : vector<1x128xf32> to vector<8x128xf32>
    %22 = arith.addf %20, %21 : vector<8x128xf32>
    %cst_10 = arith.constant 0.000000e+00 : f32
    %23 = vector.broadcast %cst_10 : f32 to vector<8x128xf32>
    %24 = arith.maximumf %22, %23 : vector<8x128xf32>
    %cst_11 = arith.constant dense<0.000000e+00> : vector<8x128xf32>
    %25 = tpu.matmul %24, %4, %cst_11 {dimension_numbers = #tpu.dot_dimension_numbers<[1], [0], [0], [1], [0, 0, 1, 1], [], []>} : vector<8x128xf32>, vector<128x128xf32>, vector<8x128xf32> -> vector<8x128xf32>
    %26 = vector.broadcast %9 : vector<1x128xf32> to vector<8x128xf32>
    %27 = arith.addf %25, %26 : vector<8x128xf32>
    %28 = vector.broadcast %10 : vector<1x128xf32> to vector<8x128xf32>
    %29 = arith.maximumf %27, %28 : vector<8x128xf32>
    %30 = vector.broadcast %11 : vector<1x128xf32> to vector<8x128xf32>
    %31 = arith.minimumf %29, %30 : vector<8x128xf32>
    %c0_12 = arith.constant 0 : index
    %c0_13 = arith.constant 0 : index
    %32 = vector.load %arg3[%c0_12, %c0_13] : memref<8x128xf32, #tpu.memory_space<vmem>>, vector<8x128xf32>
    tpu.vector_store %arg3[%c0_12, %c0_13], %31 {strides = array<i32>} : memref<8x128xf32, #tpu.memory_space<vmem>>, vector<8x128xf32>,
    return
  }
  func.func @transform_0(%arg0: i32) -> (i32, i32) {
    %c0_i32 = arith.constant 0 : i32
    %c0_i32_0 = arith.constant 0 : i32
    return %arg0, %c0_i32 : i32, i32
  }
  func.func @transform_1(%arg0: i32) -> (i32, i32) {
    %c0_i32 = arith.constant 0 : i32
    %c0_i32_0 = arith.constant 0 : i32
    %c0_i32_1 = arith.constant 0 : i32
    return %c0_i32, %c0_i32_0 : i32, i32
  }
  func.func @transform_2(%arg0: i32) -> (i32, i32) {
    %c0_i32 = arith.constant 0 : i32
    %c0_i32_0 = arith.constant 0 : i32
    return %arg0, %c0_i32 : i32, i32
  }
}

</mosaic_0001>

<llo_original>
// kernel: p_network_forward.1
$region0: #{p_network_forward.1}
  #allocation0 [shape = 'u32[]', space=smem, size = 0x4, offset = 0x4, fixed_abs, tag = 'smem constant byte address 0x4 - core index']
  #allocation1 [shape = 'u32[144,128]{1,0:T(1,128)}', space=vmem, size = 0x12000, scoped, tag = 'internal scratch']
  %s0 = inlined_call_operand.vmem [shape: f32[8,128], index: 0, kind: input, shape index: {}]
  %s1 = inlined_call_operand.hbm [shape: f32[520,128], index: 1, kind: input, shape index: {}]
  %s2 = inlined_call_operand.vmem [shape: f32[8,128], index: 2, kind: output, shape index: {}]
  %s3 = sld [smem:[#allocation0]]
  $region22: #{p_network_forward.1} parent=0
    _
  %s5 = ssub.s32 1, %s3
  %s6 = scalar_select 0, %s5, %s3
  $region1: #{p_network_forward.1} parent=0
    #allocation2 [shape = 'u8[266240]{0}', space=vmem, size = 0x41000, scoped, tag = 'input window, operand 1, single buffered']
    #allocation3 [shape = 's32[1]{0}', space=sflag, size = 0x4, scoped, tag = 'scoped memory for p_network_forward.1']
    %7 = vsyncpa [#allocation3], 0
    // Predicated region
    $region2: #{p_network_forward.1} parent=1 // pred_check
      _
    $region3: #{p_network_forward.1} parent=1 // pred_check_branch
      %9 = sbr.rel (0) target = $region5
    $region4: #{p_network_forward.1} parent=1 // pred_region
      _
    $region5: #{p_network_forward.1} parent=1 // pred_fallthru
      _
    // Predicated region
    $region6: #{p_network_forward.1} parent=1 // pred_check
      _
    $region7: #{p_network_forward.1} parent=1 // pred_check_branch
      %11 = sbr.rel (0) target = $region9
    $region8: #{p_network_forward.1} parent=1 // pred_region
      %s13 = ssub.s32 8320, 8320
      %14 = vsyncadd [#allocation3], %s13
      %s15 = sshll.u32 [#allocation2], 4
      %s16 = int_to_ptr.vmem [resolvable:$true] %s15
      %21 = dma.hbm_to_vmem [thread:$0]  %s1, 8320, %s16, [#allocation3], 128, 128, 8
    $region9: #{p_network_forward.1} parent=1 // pred_fallthru
      _
    // Predicated region
    $region10: #{p_network_forward.1} parent=1 // pred_check
      _
    $region11: #{p_network_forward.1} parent=1 // pred_check_branch
      %23 = sbr.rel (0) target = $region13
    $region12: #{p_network_forward.1} parent=1 // pred_region
      %24 = dma.done [#allocation3], 8320
    $region13: #{p_network_forward.1} parent=1 // pred_fallthru
      _
    %v25 = vld [vmem:[%s0] sm:$0xff]
    %v26 = vld [vmem:[#allocation2] sm:$0xff]
    %v27 = vld [vmem:[#allocation2 + $0x8] sm:$0xff]
    %v28 = vld [vmem:[#allocation2 + $0x10] sm:$0xff]
    %v29 = vld [vmem:[#allocation2 + $0x18] sm:$0xff]
    %v30 = vld [vmem:[#allocation2 + $0x20] sm:$0xff]
    %v31 = vld [vmem:[#allocation2 + $0x28] sm:$0xff]
    %v32 = vld [vmem:[#allocation2 + $0x30] sm:$0xff]
    %v33 = vld [vmem:[#allocation2 + $0x38] sm:$0xff]
    %v34 = vld [vmem:[#allocation2 + $0x40] sm:$0xff]
    %v35 = vld [vmem:[#allocation2 + $0x48] sm:$0xff]
    %v36 = vld [vmem:[#allocation2 + $0x50] sm:$0xff]
    %v37 = vld [vmem:[#allocation2 + $0x58] sm:$0xff]
    %v38 = vld [vmem:[#allocation2 + $0x60] sm:$0xff]
    %v39 = vld [vmem:[#allocation2 + $0x68] sm:$0xff]
    %v40 = vld [vmem:[#allocation2 + $0x70] sm:$0xff]
    %v41 = vld [vmem:[#allocation2 + $0x78] sm:$0xff]
    %v42 = vld [vmem:[#allocation2 + $0x80] sm:$0xff]
    %v43 = vld [vmem:[#allocation2 + $0x88] sm:$0xff]
    %v44 = vld [vmem:[#allocation2 + $0x90] sm:$0xff]
    %v45 = vld [vmem:[#allocation2 + $0x98] sm:$0xff]
    %v46 = vld [vmem:[#allocation2 + $0xa0] sm:$0xff]
    %v47 = vld [vmem:[#allocation2 + $0xa8] sm:$0xff]
    %v48 = vld [vmem:[#allocation2 + $0xb0] sm:$0xff]
    %v49 = vld [vmem:[#allocation2 + $0xb8] sm:$0xff]
    %v50 = vld [vmem:[#allocation2 + $0xc0] sm:$0xff]
    %v51 = vld [vmem:[#allocation2 + $0xc8] sm:$0xff]
    %v52 = vld [vmem:[#allocation2 + $0xd0] sm:$0xff]
    %v53 = vld [vmem:[#allocation2 + $0xd8] sm:$0xff]
    %v54 = vld [vmem:[#allocation2 + $0xe0] sm:$0xff]
    %v55 = vld [vmem:[#allocation2 + $0xe8] sm:$0xff]
    %v56 = vld [vmem:[#allocation2 + $0xf0] sm:$0xff]
    %v57 = vld [vmem:[#allocation2 + $0xf8] sm:$0xff]
    %v58 = vld [vmem:[#allocation2 + $0x100] sm:$0xff]
    %v59 = vld [vmem:[#allocation2 + $0x108] sm:$0xff]
    %v60 = vld [vmem:[#allocation2 + $0x110] sm:$0xff]
    %v61 = vld [vmem:[#allocation2 + $0x118] sm:$0xff]
    %v62 = vld [vmem:[#allocation2 + $0x120] sm:$0xff]
    %v63 = vld [vmem:[#allocation2 + $0x128] sm:$0xff]
    %v64 = vld [vmem:[#allocation2 + $0x130] sm:$0xff]
    %v65 = vld [vmem:[#allocation2 + $0x138] sm:$0xff]
    %v66 = vld [vmem:[#allocation2 + $0x140] sm:$0xff]
    %v67 = vld [vmem:[#allocation2 + $0x148] sm:$0xff]
    %v68 = vld [vmem:[#allocation2 + $0x150] sm:$0xff]
    %v69 = vld [vmem:[#allocation2 + $0x158] sm:$0xff]
    %v70 = vld [vmem:[#allocation2 + $0x160] sm:$0xff]
    %v71 = vld [vmem:[#allocation2 + $0x168] sm:$0xff]
    %v72 = vld [vmem:[#allocation2 + $0x170] sm:$0xff]
    %v73 = vld [vmem:[#allocation2 + $0x178] sm:$0xff]
    %v74 = vld [vmem:[#allocation2 + $0x180] sm:$0xff]
    %v75 = vld [vmem:[#allocation2 + $0x188] sm:$0xff]
    %v76 = vld [vmem:[#allocation2 + $0x190] sm:$0xff]
    %v77 = vld [vmem:[#allocation2 + $0x198] sm:$0xff]
    %v78 = vld [vmem:[#allocation2 + $0x1a0] sm:$0xff]
    %v79 = vld [vmem:[#allocation2 + $0x1a8] sm:$0xff]
    %v80 = vld [vmem:[#allocation2 + $0x1b0] sm:$0xff]
    %v81 = vld [vmem:[#allocation2 + $0x1b8] sm:$0xff]
    %v82 = vld [vmem:[#allocation2 + $0x1c0] sm:$0xff]
    %v83 = vld [vmem:[#allocation2 + $0x1c8] sm:$0xff]
    %v84 = vld [vmem:[#allocation2 + $0x1d0] sm:$0xff]
    %v85 = vld [vmem:[#allocation2 + $0x1d8] sm:$0xff]
    %v86 = vld [vmem:[#allocation2 + $0x1e0] sm:$0xff]
    %v87 = vld [vmem:[#allocation2 + $0x1e8] sm:$0xff]
    %v88 = vld [vmem:[#allocation2 + $0x1f0] sm:$0xff]
    %v89 = vld [vmem:[#allocation2 + $0x1f8] sm:$0xff]
    %v90 = vld [vmem:[#allocation2 + $0x200] sm:$0xff]
    %v91 = vlaneseq
    %v92 = vshrl.u32 %v91, 7
    %v93 = vsub.s32 0, %v92
    %v94 = vrot.slane %v90, %v93
    %95 = vmatprep.subr.mxu0 0.0
    %96 = vmatpush1.msra.mxu0 %v41
    %97 = vmatprep.subr.mxu0 0.0
    %98 = vmatpush1.msra.mxu0 %v40
    %99 = vmatprep.subr.mxu0 0.0
    %100 = vmatpush1.msra.mxu0 %v39
    %101 = vmatprep.subr.mxu0 0.0
    %102 = vmatpush1.msra.mxu0 %v38
    %103 = vmatprep.subr.mxu0 0.0
    %104 = vmatpush1.msra.mxu0 %v37
    %105 = vmatprep.subr.mxu0 0.0
    %106 = vmatpush1.msra.mxu0 %v36
    %107 = vmatprep.subr.mxu0 0.0
    %108 = vmatpush1.msra.mxu0 %v35
    %109 = vmatprep.subr.mxu0 0.0
    %110 = vmatpush1.msra.mxu0 %v34
    %111 = vmatprep.subr.mxu0 0.0
    %112 = vmatpush1.msra.mxu0 %v33
    %113 = vmatprep.subr.mxu0 0.0
    %114 = vmatpush1.msra.mxu0 %v32
    %115 = vmatprep.subr.mxu0 0.0
    %116 = vmatpush1.msra.mxu0 %v31
    %117 = vmatprep.subr.mxu0 0.0
    %118 = vmatpush1.msra.mxu0 %v30
    %119 = vmatprep.subr.mxu0 0.0
    %120 = vmatpush1.msra.mxu0 %v29
    %121 = vmatprep.subr.mxu0 0.0
    %122 = vmatpush1.msra.mxu0 %v28
    %123 = vmatprep.subr.mxu0 0.0
    %124 = vmatpush1.msra.mxu0 %v27
    %125 = vmatprep.subr.mxu0 0.0
    %126 = vmatpush1.msra.mxu0 %v26
    %127 = vmatprep.subr.mxu0 0.0
    %128 = vmatpush2.msra.mxu0 0.0
    %129 = vmatprep.subr.mxu0 0.0
    %130 = vmatpush2.msra.mxu0 0.0
    %131 = vmatprep.subr.mxu0 0.0
    %132 = vmatpush2.msra.mxu0 0.0
    %133 = vmatprep.subr.mxu0 0.0
    %134 = vmatpush2.msra.mxu0 0.0
    %135 = vmatprep.subr.mxu0 0.0
    %136 = vmatpush2.msra.mxu0 0.0
    %137 = vmatprep.subr.mxu0 0.0
    %138 = vmatpush2.msra.mxu0 0.0
    %139 = vmatprep.subr.mxu0 0.0
    %140 = vmatpush2.msra.mxu0 0.0
    %141 = vmatprep.subr.mxu0 0.0
    %142 = vmatpush2.msra.mxu0 0.0
    %143 = vmatprep.subr.mxu0 0.0
    %144 = vmatpush2.msra.mxu0 0.0
    %145 = vmatprep.subr.mxu0 0.0
    %146 = vmatpush2.msra.mxu0 0.0
    %147 = vmatprep.subr.mxu0 0.0
    %148 = vmatpush2.msra.mxu0 0.0
    %149 = vmatprep.subr.mxu0 0.0
    %150 = vmatpush2.msra.mxu0 0.0
    %151 = vmatprep.subr.mxu0 0.0
    %152 = vmatpush2.msra.mxu0 0.0
    %153 = vmatprep.subr.mxu0 0.0
    %154 = vmatpush2.msra.mxu0 0.0
    %155 = vmatprep.subr.mxu0 0.0
    %156 = vmatpush2.msra.mxu0 0.0
    %157 = vmatprep.subr.mxu0 0.0
    %158 = vmatpush2.msra.mxu0 0.0
    %159 = vmatprep.mubr.f32.mxu0 0.0
    %160 = vmatmul.mubr.f32.gmra.mxu0 %v25
    %v161 = vpop.f32.mrf.mxu0
    %v162 = vadd.f32 %v94, %v161
    %v163 = vpop.f32.mrf.mxu0
    %164 = vdwg.mxu0
    %v165 = vmax.f32 %v162, 0.0
    %v166 = vlaneseq
    %v167 = vshrl.u32 %v166, 7
    %v168 = vsub.s32 1, %v167
    %v169 = vrot.slane %v90, %v168
    %170 = vmatprep.subr.mxu0 0.0
    %171 = vmatpush1.msra.mxu0 %v57
    %172 = vmatprep.subr.mxu0 0.0
    %173 = vmatpush1.msra.mxu0 %v56
    %174 = vmatprep.subr.mxu0 0.0
    %175 = vmatpush1.msra.mxu0 %v55
    %176 = vmatprep.subr.mxu0 0.0
    %177 = vmatpush1.msra.mxu0 %v54
    %178 = vmatprep.subr.mxu0 0.0
    %179 = vmatpush1.msra.mxu0 %v53
    %180 = vmatprep.subr.mxu0 0.0
    %181 = vmatpush1.msra.mxu0 %v52
    %182 = vmatprep.subr.mxu0 0.0
    %183 = vmatpush1.msra.mxu0 %v51
    %184 = vmatprep.subr.mxu0 0.0
    %185 = vmatpush1.msra.mxu0 %v50
    %186 = vmatprep.subr.mxu0 0.0
    %187 = vmatpush1.msra.mxu0 %v49
    %188 = vmatprep.subr.mxu0 0.0
    %189 = vmatpush1.msra.mxu0 %v48
    %190 = vmatprep.subr.mxu0 0.0
    %191 = vmatpush1.msra.mxu0 %v47
    %192 = vmatprep.subr.mxu0 0.0
    %193 = vmatpush1.msra.mxu0 %v46
    %194 = vmatprep.subr.mxu0 0.0
    %195 = vmatpush1.msra.mxu0 %v45
    %196 = vmatprep.subr.mxu0 0.0
    %197 = vmatpush1.msra.mxu0 %v44
    %198 = vmatprep.subr.mxu0 0.0
    %199 = vmatpush1.msra.mxu0 %v43
    %200 = vmatprep.subr.mxu0 0.0
    %201 = vmatpush1.msra.mxu0 %v42
    %202 = vmatprep.subr.mxu0 0.0
    %203 = vmatpush2.msra.mxu0 0.0
    %204 = vmatprep.subr.mxu0 0.0
    %205 = vmatpush2.msra.mxu0 0.0
    %206 = vmatprep.subr.mxu0 0.0
    %207 = vmatpush2.msra.mxu0 0.0
    %208 = vmatprep.subr.mxu0 0.0
    %209 = vmatpush2.msra.mxu0 0.0
    %210 = vmatprep.subr.mxu0 0.0
    %211 = vmatpush2.msra.mxu0 0.0
    %212 = vmatprep.subr.mxu0 0.0
    %213 = vmatpush2.msra.mxu0 0.0
    %214 = vmatprep.subr.mxu0 0.0
    %215 = vmatpush2.msra.mxu0 0.0
    %216 = vmatprep.subr.mxu0 0.0
    %217 = vmatpush2.msra.mxu0 0.0
    %218 = vmatprep.subr.mxu0 0.0
    %219 = vmatpush2.msra.mxu0 0.0
    %220 = vmatprep.subr.mxu0 0.0
    %221 = vmatpush2.msra.mxu0 0.0
    %222 = vmatprep.subr.mxu0 0.0
    %223 = vmatpush2.msra.mxu0 0.0
    %224 = vmatprep.subr.mxu0 0.0
    %225 = vmatpush2.msra.mxu0 0.0
    %226 = vmatprep.subr.mxu0 0.0
    %227 = vmatpush2.msra.mxu0 0.0
    %228 = vmatprep.subr.mxu0 0.0
    %229 = vmatpush2.msra.mxu0 0.0
    %230 = vmatprep.subr.mxu0 0.0
    %231 = vmatpush2.msra.mxu0 0.0
    %232 = vmatprep.subr.mxu0 0.0
    %233 = vmatpush2.msra.mxu0 0.0
    %234 = vmatprep.mubr.f32.mxu0 0.0
    %235 = vmatmul.mubr.f32.gmra.mxu0 %v165
    %v236 = vpop.f32.mrf.mxu0
    %v237 = vadd.f32 %v169, %v236
    %v238 = vpop.f32.mrf.mxu0
    %239 = vdwg.mxu0
    %v240 = vlaneseq
    %v241 = vshrl.u32 %v240, 7
    %v242 = vsub.s32 2, %v241
    %v243 = vrot.slane %v90, %v242
    %244 = vmatprep.subr.mxu0 0.0
    %245 = vmatpush1.msra.mxu0 %v73
    %246 = vmatprep.subr.mxu0 0.0
    %247 = vmatpush1.msra.mxu0 %v72
    %248 = vmatprep.subr.mxu0 0.0
    %249 = vmatpush1.msra.mxu0 %v71
    %250 = vmatprep.subr.mxu0 0.0
    %251 = vmatpush1.msra.mxu0 %v70
    %252 = vmatprep.subr.mxu0 0.0
    %253 = vmatpush1.msra.mxu0 %v69
    %254 = vmatprep.subr.mxu0 0.0
    %255 = vmatpush1.msra.mxu0 %v68
    %256 = vmatprep.subr.mxu0 0.0
    %257 = vmatpush1.msra.mxu0 %v67
    %258 = vmatprep.subr.mxu0 0.0
    %259 = vmatpush1.msra.mxu0 %v66
    %260 = vmatprep.subr.mxu0 0.0
    %261 = vmatpush1.msra.mxu0 %v65
    %262 = vmatprep.subr.mxu0 0.0
    %263 = vmatpush1.msra.mxu0 %v64
    %264 = vmatprep.subr.mxu0 0.0
    %265 = vmatpush1.msra.mxu0 %v63
    %266 = vmatprep.subr.mxu0 0.0
    %267 = vmatpush1.msra.mxu0 %v62
    %268 = vmatprep.subr.mxu0 0.0
    %269 = vmatpush1.msra.mxu0 %v61
    %270 = vmatprep.subr.mxu0 0.0
    %271 = vmatpush1.msra.mxu0 %v60
    %272 = vmatprep.subr.mxu0 0.0
    %273 = vmatpush1.msra.mxu0 %v59
    %274 = vmatprep.subr.mxu0 0.0
    %275 = vmatpush1.msra.mxu0 %v58
    %276 = vmatprep.subr.mxu0 0.0
    %277 = vmatpush2.msra.mxu0 0.0
    %278 = vmatprep.subr.mxu0 0.0
    %279 = vmatpush2.msra.mxu0 0.0
    %280 = vmatprep.subr.mxu0 0.0
    %281 = vmatpush2.msra.mxu0 0.0
    %282 = vmatprep.subr.mxu0 0.0
    %283 = vmatpush2.msra.mxu0 0.0
    %284 = vmatprep.subr.mxu0 0.0
    %285 = vmatpush2.msra.mxu0 0.0
    %286 = vmatprep.subr.mxu0 0.0
    %287 = vmatpush2.msra.mxu0 0.0
    %288 = vmatprep.subr.mxu0 0.0
    %289 = vmatpush2.msra.mxu0 0.0
    %290 = vmatprep.subr.mxu0 0.0
    %291 = vmatpush2.msra.mxu0 0.0
    %292 = vmatprep.subr.mxu0 0.0
    %293 = vmatpush2.msra.mxu0 0.0
    %294 = vmatprep.subr.mxu0 0.0
    %295 = vmatpush2.msra.mxu0 0.0
    %296 = vmatprep.subr.mxu0 0.0
    %297 = vmatpush2.msra.mxu0 0.0
    %298 = vmatprep.subr.mxu0 0.0
    %299 = vmatpush2.msra.mxu0 0.0
    %300 = vmatprep.subr.mxu0 0.0
    %301 = vmatpush2.msra.mxu0 0.0
    %302 = vmatprep.subr.mxu0 0.0
    %303 = vmatpush2.msra.mxu0 0.0
    %304 = vmatprep.subr.mxu0 0.0
    %305 = vmatpush2.msra.mxu0 0.0
    %306 = vmatprep.subr.mxu0 0.0
    %307 = vmatpush2.msra.mxu0 0.0
    %308 = vmatprep.mubr.f32.mxu0 0.0
    %309 = vmatmul.mubr.f32.gmra.mxu0 %v237
    %v310 = vpop.f32.mrf.mxu0
    %v311 = vadd.f32 %v243, %v310
    %v312 = vpop.f32.mrf.mxu0
    %313 = vdwg.mxu0
    %v314 = vmax.f32 %v311, 0.0
    %v315 = vlaneseq
    %v316 = vshrl.u32 %v315, 7
    %v317 = vsub.s32 3, %v316
    %v318 = vrot.slane %v90, %v317
    %319 = vmatprep.subr.mxu0 0.0
    %320 = vmatpush1.msra.mxu0 %v89
    %321 = vmatprep.subr.mxu0 0.0
    %322 = vmatpush1.msra.mxu0 %v88
    %323 = vmatprep.subr.mxu0 0.0
    %324 = vmatpush1.msra.mxu0 %v87
    %325 = vmatprep.subr.mxu0 0.0
    %326 = vmatpush1.msra.mxu0 %v86
    %327 = vmatprep.subr.mxu0 0.0
    %328 = vmatpush1.msra.mxu0 %v85
    %329 = vmatprep.subr.mxu0 0.0
    %330 = vmatpush1.msra.mxu0 %v84
    %331 = vmatprep.subr.mxu0 0.0
    %332 = vmatpush1.msra.mxu0 %v83
    %333 = vmatprep.subr.mxu0 0.0
    %334 = vmatpush1.msra.mxu0 %v82
    %335 = vmatprep.subr.mxu0 0.0
    %336 = vmatpush1.msra.mxu0 %v81
    %337 = vmatprep.subr.mxu0 0.0
    %338 = vmatpush1.msra.mxu0 %v80
    %339 = vmatprep.subr.mxu0 0.0
    %340 = vmatpush1.msra.mxu0 %v79
    %341 = vmatprep.subr.mxu0 0.0
    %342 = vmatpush1.msra.mxu0 %v78
    %343 = vmatprep.subr.mxu0 0.0
    %344 = vmatpush1.msra.mxu0 %v77
    %345 = vmatprep.subr.mxu0 0.0
    %346 = vmatpush1.msra.mxu0 %v76
    %347 = vmatprep.subr.mxu0 0.0
    %348 = vmatpush1.msra.mxu0 %v75
    %349 = vmatprep.subr.mxu0 0.0
    %350 = vmatpush1.msra.mxu0 %v74
    %351 = vmatprep.subr.mxu0 0.0
    %352 = vmatpush2.msra.mxu0 0.0
    %353 = vmatprep.subr.mxu0 0.0
    %354 = vmatpush2.msra.mxu0 0.0
    %355 = vmatprep.subr.mxu0 0.0
    %356 = vmatpush2.msra.mxu0 0.0
    %357 = vmatprep.subr.mxu0 0.0
    %358 = vmatpush2.msra.mxu0 0.0
    %359 = vmatprep.subr.mxu0 0.0
    %360 = vmatpush2.msra.mxu0 0.0
    %361 = vmatprep.subr.mxu0 0.0
    %362 = vmatpush2.msra.mxu0 0.0
    %363 = vmatprep.subr.mxu0 0.0
    %364 = vmatpush2.msra.mxu0 0.0
    %365 = vmatprep.subr.mxu0 0.0
    %366 = vmatpush2.msra.mxu0 0.0
    %367 = vmatprep.subr.mxu0 0.0
    %368 = vmatpush2.msra.mxu0 0.0
    %369 = vmatprep.subr.mxu0 0.0
    %370 = vmatpush2.msra.mxu0 0.0
    %371 = vmatprep.subr.mxu0 0.0
    %372 = vmatpush2.msra.mxu0 0.0
    %373 = vmatprep.subr.mxu0 0.0
    %374 = vmatpush2.msra.mxu0 0.0
    %375 = vmatprep.subr.mxu0 0.0
    %376 = vmatpush2.msra.mxu0 0.0
    %377 = vmatprep.subr.mxu0 0.0
    %378 = vmatpush2.msra.mxu0 0.0
    %379 = vmatprep.subr.mxu0 0.0
    %380 = vmatpush2.msra.mxu0 0.0
    %381 = vmatprep.subr.mxu0 0.0
    %382 = vmatpush2.msra.mxu0 0.0
    %383 = vmatprep.mubr.f32.mxu0 0.0
    %384 = vmatmul.mubr.f32.gmra.mxu0 %v314
    %v385 = vpop.f32.mrf.mxu0
    %v386 = vadd.f32 %v318, %v385
    %v387 = vpop.f32.mrf.mxu0
    %388 = vdwg.mxu0
    %v389 = vlaneseq
    %v390 = vshrl.u32 %v389, 7
    %v391 = vsub.s32 4, %v390
    %v392 = vrot.slane %v90, %v391
    %v393 = vmax.f32 %v386, %v392
    %v394 = vlaneseq
    %v395 = vshrl.u32 %v394, 7
    %v396 = vsub.s32 5, %v395
    %v397 = vrot.slane %v90, %v396
    %v398 = vmin.f32 %v393, %v397
    %399 = vst [vmem:[%s2] sm:$0xff] %v398
    // Predicated region
    $region14: #{p_network_forward.1} parent=1 // pred_check
      _
    $region15: #{p_network_forward.1} parent=1 // pred_check_branch
      %401 = sbr.rel (0) target = $region17
    $region16: #{p_network_forward.1} parent=1 // pred_region
      _
    $region17: #{p_network_forward.1} parent=1 // pred_fallthru
      _
    // Predicated region
    $region18: #{p_network_forward.1} parent=1 // pred_check
      _
    $region19: #{p_network_forward.1} parent=1 // pred_check_branch
      %403 = sbr.rel (0) target = $region21
    $region20: #{p_network_forward.1} parent=1 // pred_region
      _
    $region21: #{p_network_forward.1} parent=1 // pred_fallthru
      _
    %404 = vsyncpa [#allocation3], 1

</llo_original>
